<compile_context>
chip_gen: v7x
topology: tpu7x:2x2x1
jax: 0.10.0
libtpu: 0.0.40
codegen_flags: <defaults>
</compile_context>

<pallas_src>
import functools

import jax
import jax.numpy as jnp
from jax.experimental import pallas as pl
from jax.experimental.pallas import tpu as pltpu


def _round_up(n: int, m: int) -> int:
    return ((n + m - 1) // m) * m


def _mlp_kernel(*refs, softplus: bool, num_layers: int):
    """Fused MLP: relu(xW1+b1) -> ... -> relu(.W_{L-1}+b) -> .W_L+b [-> softplus].

    refs = (x_ref, w1_ref, b1_ref, ..., wL_ref, bL_ref, o_ref)
    """
    x_ref = refs[0]
    o_ref = refs[-1]
    param_refs = refs[1:-1]

    # Cast on load: no-op for f32 inputs, enables bf16-stored activations.
    z = x_ref[...].astype(jnp.float32)

    for i in range(num_layers):
        w = param_refs[2 * i][...]
        b = param_refs[2 * i + 1][...]
        z = jnp.dot(z, w, preferred_element_type=jnp.float32) + b
        if i < num_layers - 1:
            z = jnp.maximum(z, 0.0)        # relu on hidden layers only

    if softplus:
        z = jax.nn.softplus(z)

    o_ref[...] = z.astype(o_ref.dtype)


def nn_forward(x, params, *, softplus=False, tb=None, max_tb=1024):
    """Run the fused MLP Pallas kernel.

    x: (B, input_dim) float32 (or bf16)
    params: ((W1,b1), ..., (WL,bL)) with W_i of shape (in_i, out_i),
            b_i of shape (1, out_i)  (already transposed vs. torch Linear).
    tb: optional batch tile override (rounded up to a multiple of 8).
    """
    B, d_in = x.shape
    num_layers = len(params)
    assert params[0][0].shape[0] == d_in
    d_out = params[-1][0].shape[1]

    # --- choose batch tile: as large as possible, capped, sublane-aligned ---
    if tb is None:
        tb = min(max_tb, _round_up(B, 8))
    tb = max(8, _round_up(int(tb), 8))

    # --- pad batch so the grid covers it exactly (no divisibility assert) ---
    b_pad = _round_up(B, tb)
    xp = x if b_pad == B else jnp.pad(x, ((0, b_pad - B), (0, 0)))
    grid = (b_pad // tb,)

    batch_tile = lambda i: (i, 0)   # activations: tile over batch
    full = lambda i: (0, 0)         # weights / biases: whole array every step

    in_specs = [pl.BlockSpec((tb, d_in), batch_tile)]
    flat_params = []
    for w, b in params:
        in_specs.append(pl.BlockSpec(w.shape, full))
        in_specs.append(pl.BlockSpec(b.shape, full))
        flat_params.extend((w, b))

    kernel = functools.partial(_mlp_kernel, softplus=softplus,
                               num_layers=num_layers)

    out = pl.pallas_call(
        kernel,
        out_shape=jax.ShapeDtypeStruct((b_pad, d_out), x.dtype),
        grid_spec=pltpu.PrefetchScalarGridSpec(
            num_scalar_prefetch=0,
            grid=grid,
            in_specs=in_specs,
            out_specs=pl.BlockSpec((tb, d_out), batch_tile),
        ),
        compiler_params=pltpu.CompilerParams(
            dimension_semantics=("parallel",),
        ),
    )(xp, *flat_params)

    return out if b_pad == B else out[:B]


def init_params(key, input_dim, hidden_units, out_dim):
    """Deterministic parameter init, matching nn.Linear shapes but stored as
    (in, out).  Biases are non-zero here to exercise broadcast correctness."""
    dims = [input_dim] + list(hidden_units) + [out_dim]
    params = []
    for di, do in zip(dims[:-1], dims[1:]):
        key, kw, kb = jax.random.split(key, 3)
        w = 0.4 * jax.random.normal(kw, (di, do), dtype=jnp.float32)
        b = 0.1 * jax.random.normal(kb, (1, do), dtype=jnp.float32)
        params.append((w, b))
    return tuple(params)


def nn_forward_ref(x, params, *, softplus=False):
    """Pure-JAX reference for correctness checking."""
    z = x
    for i, (w, b) in enumerate(params):
        z = z @ w + b
        if i < len(params) - 1:
            z = jnp.maximum(z, 0.0)
    if softplus:
        z = jax.nn.softplus(z)
    return z


if __name__ == "__main__":
    # Module defaults: input_dim=10, hidden_units=[5, 5], out_dim=10,
    # activation='relu'.
    input_dim, hidden_units, out_dim = 10, [5, 5], 10

    key = jax.random.PRNGKey(0)
    kx1, kx2, kp = jax.random.split(key, 3)
    params = init_params(kp, input_dim, hidden_units, out_dim)

    # Case 1: small batch -> single grid step (tb = B), no softplus.
    batch1 = 16
    x1 = jax.random.normal(kx1, (batch1, input_dim), dtype=jnp.float32)
    out1 = jax.block_until_ready(nn_forward(x1, params, softplus=False))
    ref1 = nn_forward_ref(x1, params, softplus=False)
    assert out1.shape == (batch1, out_dim)
    assert jnp.allclose(out1, ref1, atol=1e-5, rtol=1e-5), "mismatch (case 1)"

    # Case 2: batch not a multiple of 8 -> exercises host-side padding + slice,
    #         with softplus=True.
    batch2 = 37
    x2 = jax.random.normal(kx2, (batch2, input_dim), dtype=jnp.float32)
    out2 = jax.block_until_ready(nn_forward(x2, params, softplus=True))
    ref2 = nn_forward_ref(x2, params, softplus=True)
    assert out2.shape == (batch2, out_dim)
    assert jnp.allclose(out2, ref2, atol=1e-5, rtol=1e-5), "mismatch (case 2)"

    # TODO(synk): only the 'relu' activation of the module's ACTIVATIONS table
    # is implemented (the module default); other activations would just swap
    # the jnp.maximum in _mlp_kernel.
    print("KERNEL_OK")
</pallas_src>

<mosaic_0001>
module attributes {stable_mosaic.version = 11 : i64} {
  func.func @_mlp_kernel(%arg0: i32, %arg1: memref<16x10xf32, #tpu.memory_space<vmem>>, %arg2: memref<10x5xf32, #tpu.memory_space<vmem>>, %arg3: memref<1x5xf32, #tpu.memory_space<vmem>>, %arg4: memref<5x5xf32, #tpu.memory_space<vmem>>, %arg5: memref<1x5xf32, #tpu.memory_space<vmem>>, %arg6: memref<5x10xf32, #tpu.memory_space<vmem>>, %arg7: memref<1x10xf32, #tpu.memory_space<vmem>>, %arg8: memref<16x10xf32, #tpu.memory_space<vmem>>) attributes {dimension_semantics = [#tpu.dimension_semantics<parallel>], iteration_bounds = array<i64: 1>, scalar_prefetch = 0 : i64, scratch_operands = 0 : i64, tpu.core_type = #tpu.core_type<tc>, window_params = [{transform_indices = @transform_0, window_bounds = array<i64: 16, 10>}, {pipeline_mode = #tpu.pipeline_mode<synchronous>, transform_indices = @transform_1, window_bounds = array<i64: 10, 5>}, {pipeline_mode = #tpu.pipeline_mode<synchronous>, transform_indices = @transform_2, window_bounds = array<i64: 1, 5>}, {pipeline_mode = #tpu.pipeline_mode<synchronous>, transform_indices = @transform_3, window_bounds = array<i64: 5, 5>}, {pipeline_mode = #tpu.pipeline_mode<synchronous>, transform_indices = @transform_4, window_bounds = array<i64: 1, 5>}, {pipeline_mode = #tpu.pipeline_mode<synchronous>, transform_indices = @transform_5, window_bounds = array<i64: 5, 10>}, {pipeline_mode = #tpu.pipeline_mode<synchronous>, transform_indices = @transform_6, window_bounds = array<i64: 1, 10>}, {transform_indices = @transform_7, window_bounds = array<i64: 16, 10>}]} {
    %c0 = arith.constant 0 : index
    %c0_0 = arith.constant 0 : index
    %0 = vector.load %arg1[%c0, %c0_0] : memref<16x10xf32, #tpu.memory_space<vmem>>, vector<16x10xf32>
    %c0_1 = arith.constant 0 : index
    %c0_2 = arith.constant 0 : index
    %1 = vector.load %arg2[%c0_1, %c0_2] : memref<10x5xf32, #tpu.memory_space<vmem>>, vector<10x5xf32>
    %c0_3 = arith.constant 0 : index
    %c0_4 = arith.constant 0 : index
    %2 = vector.load %arg3[%c0_3, %c0_4] : memref<1x5xf32, #tpu.memory_space<vmem>>, vector<1x5xf32>
    %cst = arith.constant dense<0.000000e+00> : vector<16x5xf32>
    %3 = tpu.matmul %0, %1, %cst {dimension_numbers = #tpu.dot_dimension_numbers<[1], [0], [0], [1], [0, 0, 1, 1], [], []>} : vector<16x10xf32>, vector<10x5xf32>, vector<16x5xf32> -> vector<16x5xf32>
    %4 = vector.broadcast %2 : vector<1x5xf32> to vector<16x5xf32>
    %5 = arith.addf %3, %4 : vector<16x5xf32>
    %cst_5 = arith.constant 0.000000e+00 : f32
    %6 = vector.broadcast %cst_5 : f32 to vector<16x5xf32>
    %7 = arith.maximumf %5, %6 : vector<16x5xf32>
    %c0_6 = arith.constant 0 : index
    %c0_7 = arith.constant 0 : index
    %8 = vector.load %arg4[%c0_6, %c0_7] : memref<5x5xf32, #tpu.memory_space<vmem>>, vector<5x5xf32>
    %c0_8 = arith.constant 0 : index
    %c0_9 = arith.constant 0 : index
    %9 = vector.load %arg5[%c0_8, %c0_9] : memref<1x5xf32, #tpu.memory_space<vmem>>, vector<1x5xf32>
    %cst_10 = arith.constant dense<0.000000e+00> : vector<16x5xf32>
    %10 = tpu.matmul %7, %8, %cst_10 {dimension_numbers = #tpu.dot_dimension_numbers<[1], [0], [0], [1], [0, 0, 1, 1], [], []>} : vector<16x5xf32>, vector<5x5xf32>, vector<16x5xf32> -> vector<16x5xf32>
    %11 = vector.broadcast %9 : vector<1x5xf32> to vector<16x5xf32>
    %12 = arith.addf %10, %11 : vector<16x5xf32>
    %cst_11 = arith.constant 0.000000e+00 : f32
    %13 = vector.broadcast %cst_11 : f32 to vector<16x5xf32>
    %14 = arith.maximumf %12, %13 : vector<16x5xf32>
    %c0_12 = arith.constant 0 : index
    %c0_13 = arith.constant 0 : index
    %15 = vector.load %arg6[%c0_12, %c0_13] : memref<5x10xf32, #tpu.memory_space<vmem>>, vector<5x10xf32>
    %c0_14 = arith.constant 0 : index
    %c0_15 = arith.constant 0 : index
    %16 = vector.load %arg7[%c0_14, %c0_15] : memref<1x10xf32, #tpu.memory_space<vmem>>, vector<1x10xf32>
    %cst_16 = arith.constant dense<0.000000e+00> : vector<16x10xf32>
    %17 = tpu.matmul %14, %15, %cst_16 {dimension_numbers = #tpu.dot_dimension_numbers<[1], [0], [0], [1], [0, 0, 1, 1], [], []>} : vector<16x5xf32>, vector<5x10xf32>, vector<16x10xf32> -> vector<16x10xf32>
    %18 = vector.broadcast %16 : vector<1x10xf32> to vector<16x10xf32>
    %19 = arith.addf %17, %18 : vector<16x10xf32>
    %c0_17 = arith.constant 0 : index
    %c0_18 = arith.constant 0 : index
    %20 = vector.load %arg8[%c0_17, %c0_18] : memref<16x10xf32, #tpu.memory_space<vmem>>, vector<16x10xf32>
    tpu.vector_store %arg8[%c0_17, %c0_18], %19 {strides = array<i32>} : memref<16x10xf32, #tpu.memory_space<vmem>>, vector<16x10xf32>,
    return
  }
  func.func @transform_0(%arg0: i32) -> (i32, i32) {
    %c0_i32 = arith.constant 0 : i32
    %c0_i32_0 = arith.constant 0 : i32
    return %arg0, %c0_i32 : i32, i32
  }
  func.func @transform_1(%arg0: i32) -> (i32, i32) {
    %c0_i32 = arith.constant 0 : i32
    %c0_i32_0 = arith.constant 0 : i32
    %c0_i32_1 = arith.constant 0 : i32
    return %c0_i32, %c0_i32_0 : i32, i32
  }
  func.func @transform_2(%arg0: i32) -> (i32, i32) {
    %c0_i32 = arith.constant 0 : i32
    %c0_i32_0 = arith.constant 0 : i32
    %c0_i32_1 = arith.constant 0 : i32
    return %c0_i32, %c0_i32_0 : i32, i32
  }
  func.func @transform_3(%arg0: i32) -> (i32, i32) {
    %c0_i32 = arith.constant 0 : i32
    %c0_i32_0 = arith.constant 0 : i32
    %c0_i32_1 = arith.constant 0 : i32
    return %c0_i32, %c0_i32_0 : i32, i32
  }
  func.func @transform_4(%arg0: i32) -> (i32, i32) {
    %c0_i32 = arith.constant 0 : i32
    %c0_i32_0 = arith.constant 0 : i32
    %c0_i32_1 = arith.constant 0 : i32
    return %c0_i32, %c0_i32_0 : i32, i32
  }
  func.func @transform_5(%arg0: i32) -> (i32, i32) {
    %c0_i32 = arith.constant 0 : i32
    %c0_i32_0 = arith.constant 0 : i32
    %c0_i32_1 = arith.constant 0 : i32
    return %c0_i32, %c0_i32_0 : i32, i32
  }
  func.func @transform_6(%arg0: i32) -> (i32, i32) {
    %c0_i32 = arith.constant 0 : i32
    %c0_i32_0 = arith.constant 0 : i32
    %c0_i32_1 = arith.constant 0 : i32
    return %c0_i32, %c0_i32_0 : i32, i32
  }
  func.func @transform_7(%arg0: i32) -> (i32, i32) {
    %c0_i32 = arith.constant 0 : i32
    %c0_i32_0 = arith.constant 0 : i32
    return %arg0, %c0_i32 : i32, i32
  }
}

</mosaic_0001>

<llo_original>
// kernel: tpu_custom_call.1
$region0: #{tpu_custom_call.1}
  #allocation0 [shape = 'u32[]', space=smem, size = 0x4, offset = 0x4, fixed_abs, tag = 'smem constant byte address 0x4 - core index']
  #allocation1 [shape = 'u32[144,128]{1,0:T(1,128)}', space=vmem, size = 0x12000, scoped, tag = 'internal scratch']
  %s0 = inlined_call_operand.vmem [shape: f32[16,10], index: 0, kind: input, shape index: {}]
  %s1 = inlined_call_operand.vmem [shape: f32[10,5], index: 1, kind: input, shape index: {}]
  %s2 = inlined_call_operand.vmem [shape: f32[1,5], index: 2, kind: input, shape index: {}]
  %s3 = inlined_call_operand.vmem [shape: f32[5,5], index: 3, kind: input, shape index: {}]
  %s4 = inlined_call_operand.vmem [shape: f32[1,5], index: 4, kind: input, shape index: {}]
  %s5 = inlined_call_operand.vmem [shape: f32[5,10], index: 5, kind: input, shape index: {}]
  %s6 = inlined_call_operand.vmem [shape: f32[1,10], index: 6, kind: input, shape index: {}]
  %s7 = inlined_call_operand.hbm [shape: f32[16,10], index: 7, kind: output, shape index: {}]
  %s8 = sld [smem:[#allocation0]]
  $region38: #{tpu_custom_call.1} parent=0
    _
  %s10 = ssub.s32 1, %s8
  %s11 = scalar_select 0, %s10, %s8
  $region1: #{tpu_custom_call.1} parent=0
    #allocation2 [shape = 'u8[8192]{0}', space=vmem, size = 0x2000, scoped, tag = 'output window, operand 0, single buffered']
    #allocation3 [shape = 's32[1]{0}', space=sflag, size = 0x4, scoped, tag = 'scoped memory for tpu_custom_call.1']
    %12 = vsyncpa [#allocation3], 0
    // Predicated region
    $region2: #{tpu_custom_call.1} parent=1 // pred_check
      _
    $region3: #{tpu_custom_call.1} parent=1 // pred_check_branch
      %14 = sbr.rel (0) target = $region5
    $region4: #{tpu_custom_call.1} parent=1 // pred_region
      _
    $region5: #{tpu_custom_call.1} parent=1 // pred_fallthru
      _
    // Predicated region
    $region6: #{tpu_custom_call.1} parent=1 // pred_check
      _
    $region7: #{tpu_custom_call.1} parent=1 // pred_check_branch
      %16 = sbr.rel (0) target = $region9
    $region8: #{tpu_custom_call.1} parent=1 // pred_region
      _
    $region9: #{tpu_custom_call.1} parent=1 // pred_fallthru
      _
    // Predicated region
    $region10: #{tpu_custom_call.1} parent=1 // pred_check
      _
    $region11: #{tpu_custom_call.1} parent=1 // pred_check_branch
      %18 = sbr.rel (0) target = $region13
    $region12: #{tpu_custom_call.1} parent=1 // pred_region
      _
    $region13: #{tpu_custom_call.1} parent=1 // pred_fallthru
      _
    // Predicated region
    $region14: #{tpu_custom_call.1} parent=1 // pred_check
      _
    $region15: #{tpu_custom_call.1} parent=1 // pred_check_branch
      %20 = sbr.rel (0) target = $region17
    $region16: #{tpu_custom_call.1} parent=1 // pred_region
      _
    $region17: #{tpu_custom_call.1} parent=1 // pred_fallthru
      _
    // Predicated region
    $region18: #{tpu_custom_call.1} parent=1 // pred_check
      _
    $region19: #{tpu_custom_call.1} parent=1 // pred_check_branch
      %22 = sbr.rel (0) target = $region21
    $region20: #{tpu_custom_call.1} parent=1 // pred_region
      _
    $region21: #{tpu_custom_call.1} parent=1 // pred_fallthru
      _
    // Predicated region
    $region22: #{tpu_custom_call.1} parent=1 // pred_check
      _
    $region23: #{tpu_custom_call.1} parent=1 // pred_check_branch
      %24 = sbr.rel (0) target = $region25
    $region24: #{tpu_custom_call.1} parent=1 // pred_region
      _
    $region25: #{tpu_custom_call.1} parent=1 // pred_fallthru
      _
    // Predicated region
    $region26: #{tpu_custom_call.1} parent=1 // pred_check
      _
    $region27: #{tpu_custom_call.1} parent=1 // pred_check_branch
      %26 = sbr.rel (0) target = $region29
    $region28: #{tpu_custom_call.1} parent=1 // pred_region
      _
    $region29: #{tpu_custom_call.1} parent=1 // pred_fallthru
      _
    %v27 = vld [vmem:[%s0] sm:$0xff]
    %v28 = vld [vmem:[%s0 + $0x8] sm:$0xff]
    %v29 = vld [vmem:[%s1] sm:$0xff]
    %v30 = vld [vmem:[%s1 + $0x8] sm:$0x3]
    %v31 = vld [vmem:[%s2] sm:$0x1]
    %v33 = vlaneseq
    %v34 = vshrl.u32 %v33, 7
    %v35 = vsub.s32 0, %v34
    %v36 = vrot.slane %v31, %v35
    %vm38 = vcmask 80896
    %v40 = vsel %vm38, %v27, 0
    %v43 = vsel %vm38, %v28, 0
    %vm45 = vcmask 1041408
    %v47 = vsel %vm45, %v30, 0
    %49 = vmatprep.subr.mxu0 0.0
    %50 = vmatpush1.msra.mxu0 %v29
    %51 = vmatprep.subr.mxu0 0.0
    %52 = vmatpush1.msra.mxu0 %v47
    %53 = vmatprep.subr.mxu0 0.0
    %54 = vmatpush1.msra.mxu0 0.0
    %55 = vmatprep.subr.mxu0 0.0
    %56 = vmatpush1.msra.mxu0 0.0
    %57 = vmatprep.subr.mxu0 0.0
    %58 = vmatpush1.msra.mxu0 0.0
    %59 = vmatprep.subr.mxu0 0.0
    %60 = vmatpush1.msra.mxu0 0.0
    %61 = vmatprep.subr.mxu0 0.0
    %62 = vmatpush1.msra.mxu0 0.0
    %63 = vmatprep.subr.mxu0 0.0
    %64 = vmatpush1.msra.mxu0 0.0
    %65 = vmatprep.subr.mxu0 0.0
    %66 = vmatpush1.msra.mxu0 0.0
    %67 = vmatprep.subr.mxu0 0.0
    %68 = vmatpush1.msra.mxu0 0.0
    %69 = vmatprep.subr.mxu0 0.0
    %70 = vmatpush1.msra.mxu0 0.0
    %71 = vmatprep.subr.mxu0 0.0
    %72 = vmatpush1.msra.mxu0 0.0
    %73 = vmatprep.subr.mxu0 0.0
    %74 = vmatpush1.msra.mxu0 0.0
    %75 = vmatprep.subr.mxu0 0.0
    %76 = vmatpush1.msra.mxu0 0.0
    %77 = vmatprep.subr.mxu0 0.0
    %78 = vmatpush1.msra.mxu0 0.0
    %79 = vmatprep.subr.mxu0 0.0
    %80 = vmatpush1.msra.mxu0 0.0
    %81 = vmatprep.subr.mxu0 0.0
    %82 = vmatpush1.msra.mxu0 0.0
    %83 = vmatprep.subr.mxu0 0.0
    %84 = vmatpush1.msra.mxu0 0.0
    %85 = vmatprep.subr.mxu0 0.0
    %86 = vmatpush1.msra.mxu0 0.0
    %87 = vmatprep.subr.mxu0 0.0
    %88 = vmatpush1.msra.mxu0 0.0
    %89 = vmatprep.subr.mxu0 0.0
    %90 = vmatpush1.msra.mxu0 0.0
    %91 = vmatprep.subr.mxu0 0.0
    %92 = vmatpush1.msra.mxu0 0.0
    %93 = vmatprep.subr.mxu0 0.0
    %94 = vmatpush1.msra.mxu0 0.0
    %95 = vmatprep.subr.mxu0 0.0
    %96 = vmatpush1.msra.mxu0 0.0
    %97 = vmatprep.subr.mxu0 0.0
    %98 = vmatpush1.msra.mxu0 0.0
    %99 = vmatprep.subr.mxu0 0.0
    %100 = vmatpush1.msra.mxu0 0.0
    %101 = vmatprep.subr.mxu0 0.0
    %102 = vmatpush1.msra.mxu0 0.0
    %103 = vmatprep.subr.mxu0 0.0
    %104 = vmatpush1.msra.mxu0 0.0
    %105 = vmatprep.subr.mxu0 0.0
    %106 = vmatpush1.msra.mxu0 0.0
    %107 = vmatprep.subr.mxu0 0.0
    %108 = vmatpush1.msra.mxu0 0.0
    %109 = vmatprep.subr.mxu0 0.0
    %110 = vmatpush1.msra.mxu0 0.0
    %111 = vmatprep.subr.mxu0 0.0
    %112 = vmatpush1.msra.mxu0 0.0
    %113 = vmatprep.mubr.f32.mxu0 0.0
    %114 = vmatmul.mubr.f32.gmra.mrb[0].mxu0 %v40
    %v115 = vpop.f32.mrb[0].mxu0
    %v116 = vadd.f32 %v36, %v115
    %v117 = vpop.f32.mrb[0].mxu0
    %118 = vmatprep.mubr.f32.mxu0 0.0
    %119 = vmatmul.mubr.f32.gmra.mrb[0].mxu0 %v43
    %v120 = vpop.f32.mrb[0].mxu0
    %v121 = vadd.f32 %v36, %v120
    %v122 = vpop.f32.mrb[0].mxu0
    %123 = vdwg.mxu0
    %v124 = vmax.f32 %v116, 0.0
    %v125 = vmax.f32 %v121, 0.0
    %v126 = vld [vmem:[%s3] sm:$0x1f]
    %v127 = vld [vmem:[%s4] sm:$0x1]
    %v129 = vlaneseq
    %v130 = vshrl.u32 %v129, 7
    %v131 = vsub.s32 0, %v130
    %v132 = vrot.slane %v127, %v131
    %vm134 = vcmask 39936
    %v136 = vsel %vm134, %v124, 0
    %v139 = vsel %vm134, %v125, 0
    %vm141 = vcmask 1044480
    %v143 = vsel %vm141, %v126, 0
    %145 = vmatprep.subr.mxu0 0.0
    %146 = vmatpush1.msra.mxu0 %v143
    %147 = vmatprep.subr.mxu0 0.0
    %148 = vmatpush1.msra.mxu0 0.0
    %149 = vmatprep.subr.mxu0 0.0
    %150 = vmatpush1.msra.mxu0 0.0
    %151 = vmatprep.subr.mxu0 0.0
    %152 = vmatpush1.msra.mxu0 0.0
    %153 = vmatprep.subr.mxu0 0.0
    %154 = vmatpush1.msra.mxu0 0.0
    %155 = vmatprep.subr.mxu0 0.0
    %156 = vmatpush1.msra.mxu0 0.0
    %157 = vmatprep.subr.mxu0 0.0
    %158 = vmatpush1.msra.mxu0 0.0
    %159 = vmatprep.subr.mxu0 0.0
    %160 = vmatpush1.msra.mxu0 0.0
    %161 = vmatprep.subr.mxu0 0.0
    %162 = vmatpush1.msra.mxu0 0.0
    %163 = vmatprep.subr.mxu0 0.0
    %164 = vmatpush1.msra.mxu0 0.0
    %165 = vmatprep.subr.mxu0 0.0
    %166 = vmatpush1.msra.mxu0 0.0
    %167 = vmatprep.subr.mxu0 0.0
    %168 = vmatpush1.msra.mxu0 0.0
    %169 = vmatprep.subr.mxu0 0.0
    %170 = vmatpush1.msra.mxu0 0.0
    %171 = vmatprep.subr.mxu0 0.0
    %172 = vmatpush1.msra.mxu0 0.0
    %173 = vmatprep.subr.mxu0 0.0
    %174 = vmatpush1.msra.mxu0 0.0
    %175 = vmatprep.subr.mxu0 0.0
    %176 = vmatpush1.msra.mxu0 0.0
    %177 = vmatprep.subr.mxu0 0.0
    %178 = vmatpush1.msra.mxu0 0.0
    %179 = vmatprep.subr.mxu0 0.0
    %180 = vmatpush1.msra.mxu0 0.0
    %181 = vmatprep.subr.mxu0 0.0
    %182 = vmatpush1.msra.mxu0 0.0
    %183 = vmatprep.subr.mxu0 0.0
    %184 = vmatpush1.msra.mxu0 0.0
    %185 = vmatprep.subr.mxu0 0.0
    %186 = vmatpush1.msra.mxu0 0.0
    %187 = vmatprep.subr.mxu0 0.0
    %188 = vmatpush1.msra.mxu0 0.0
    %189 = vmatprep.subr.mxu0 0.0
    %190 = vmatpush1.msra.mxu0 0.0
    %191 = vmatprep.subr.mxu0 0.0
    %192 = vmatpush1.msra.mxu0 0.0
    %193 = vmatprep.subr.mxu0 0.0
    %194 = vmatpush1.msra.mxu0 0.0
    %195 = vmatprep.subr.mxu0 0.0
    %196 = vmatpush1.msra.mxu0 0.0
    %197 = vmatprep.subr.mxu0 0.0
    %198 = vmatpush1.msra.mxu0 0.0
    %199 = vmatprep.subr.mxu0 0.0
    %200 = vmatpush1.msra.mxu0 0.0
    %201 = vmatprep.subr.mxu0 0.0
    %202 = vmatpush1.msra.mxu0 0.0
    %203 = vmatprep.subr.mxu0 0.0
    %204 = vmatpush1.msra.mxu0 0.0
    %205 = vmatprep.subr.mxu0 0.0
    %206 = vmatpush1.msra.mxu0 0.0
    %207 = vmatprep.subr.mxu0 0.0
    %208 = vmatpush1.msra.mxu0 0.0
    %209 = vmatprep.mubr.f32.mxu0 0.0
    %210 = vmatmul.mubr.f32.gmra.mrb[0].mxu0 %v136
    %v211 = vpop.f32.mrb[0].mxu0
    %v212 = vadd.f32 %v132, %v211
    %v213 = vpop.f32.mrb[0].mxu0
    %214 = vmatprep.mubr.f32.mxu0 0.0
    %215 = vmatmul.mubr.f32.gmra.mrb[0].mxu0 %v139
    %v216 = vpop.f32.mrb[0].mxu0
    %v217 = vadd.f32 %v132, %v216
    %v218 = vpop.f32.mrb[0].mxu0
    %219 = vdwg.mxu0
    %v220 = vmax.f32 %v212, 0.0
    %v221 = vmax.f32 %v217, 0.0
    %v222 = vld [vmem:[%s5] sm:$0x1f]
    %v223 = vld [vmem:[%s6] sm:$0x1]
    %v225 = vlaneseq
    %v226 = vshrl.u32 %v225, 7
    %v227 = vsub.s32 0, %v226
    %v228 = vrot.slane %v223, %v227
    %v231 = vsel %vm134, %v220, 0
    %v234 = vsel %vm134, %v221, 0
    %v237 = vsel %vm141, %v222, 0
    %239 = vmatprep.subr.mxu0 0.0
    %240 = vmatpush1.msra.mxu0 %v237
    %241 = vmatprep.subr.mxu0 0.0
    %242 = vmatpush1.msra.mxu0 0.0
    %243 = vmatprep.subr.mxu0 0.0
    %244 = vmatpush1.msra.mxu0 0.0
    %245 = vmatprep.subr.mxu0 0.0
    %246 = vmatpush1.msra.mxu0 0.0
    %247 = vmatprep.subr.mxu0 0.0
    %248 = vmatpush1.msra.mxu0 0.0
    %249 = vmatprep.subr.mxu0 0.0
    %250 = vmatpush1.msra.mxu0 0.0
    %251 = vmatprep.subr.mxu0 0.0
    %252 = vmatpush1.msra.mxu0 0.0
    %253 = vmatprep.subr.mxu0 0.0
    %254 = vmatpush1.msra.mxu0 0.0
    %255 = vmatprep.subr.mxu0 0.0
    %256 = vmatpush1.msra.mxu0 0.0
    %257 = vmatprep.subr.mxu0 0.0
    %258 = vmatpush1.msra.mxu0 0.0
    %259 = vmatprep.subr.mxu0 0.0
    %260 = vmatpush1.msra.mxu0 0.0
    %261 = vmatprep.subr.mxu0 0.0
    %262 = vmatpush1.msra.mxu0 0.0
    %263 = vmatprep.subr.mxu0 0.0
    %264 = vmatpush1.msra.mxu0 0.0
    %265 = vmatprep.subr.mxu0 0.0
    %266 = vmatpush1.msra.mxu0 0.0
    %267 = vmatprep.subr.mxu0 0.0
    %268 = vmatpush1.msra.mxu0 0.0
    %269 = vmatprep.subr.mxu0 0.0
    %270 = vmatpush1.msra.mxu0 0.0
    %271 = vmatprep.subr.mxu0 0.0
    %272 = vmatpush1.msra.mxu0 0.0
    %273 = vmatprep.subr.mxu0 0.0
    %274 = vmatpush1.msra.mxu0 0.0
    %275 = vmatprep.subr.mxu0 0.0
    %276 = vmatpush1.msra.mxu0 0.0
    %277 = vmatprep.subr.mxu0 0.0
    %278 = vmatpush1.msra.mxu0 0.0
    %279 = vmatprep.subr.mxu0 0.0
    %280 = vmatpush1.msra.mxu0 0.0
    %281 = vmatprep.subr.mxu0 0.0
    %282 = vmatpush1.msra.mxu0 0.0
    %283 = vmatprep.subr.mxu0 0.0
    %284 = vmatpush1.msra.mxu0 0.0
    %285 = vmatprep.subr.mxu0 0.0
    %286 = vmatpush1.msra.mxu0 0.0
    %287 = vmatprep.subr.mxu0 0.0
    %288 = vmatpush1.msra.mxu0 0.0
    %289 = vmatprep.subr.mxu0 0.0
    %290 = vmatpush1.msra.mxu0 0.0
    %291 = vmatprep.subr.mxu0 0.0
    %292 = vmatpush1.msra.mxu0 0.0
    %293 = vmatprep.subr.mxu0 0.0
    %294 = vmatpush1.msra.mxu0 0.0
    %295 = vmatprep.subr.mxu0 0.0
    %296 = vmatpush1.msra.mxu0 0.0
    %297 = vmatprep.subr.mxu0 0.0
    %298 = vmatpush1.msra.mxu0 0.0
    %299 = vmatprep.subr.mxu0 0.0
    %300 = vmatpush1.msra.mxu0 0.0
    %301 = vmatprep.subr.mxu0 0.0
    %302 = vmatpush1.msra.mxu0 0.0
    %303 = vmatprep.mubr.f32.mxu0 0.0
    %304 = vmatmul.mubr.f32.gmra.mrb[0].mxu0 %v231
    %v305 = vpop.f32.mrb[0].mxu0
    %v306 = vadd.f32 %v228, %v305
    %v307 = vpop.f32.mrb[0].mxu0
    %308 = vmatprep.mubr.f32.mxu0 0.0
    %309 = vmatmul.mubr.f32.gmra.mrb[0].mxu0 %v234
    %v310 = vpop.f32.mrb[0].mxu0
    %v311 = vadd.f32 %v228, %v310
    %v312 = vpop.f32.mrb[0].mxu0
    %313 = vdwg.mxu0
    %314 = vst.msk [vmem:[#allocation2] sm:$0xff] %vm38, %v306
    %315 = vst.msk [vmem:[#allocation2 + $0x8] sm:$0xff] %vm38, %v311
    // Predicated region
    $region30: #{tpu_custom_call.1} parent=1 // pred_check
      _
    $region31: #{tpu_custom_call.1} parent=1 // pred_check_branch
      %317 = sbr.rel (0) target = $region33
    $region32: #{tpu_custom_call.1} parent=1 // pred_region
      %s319 = ssub.s32 256, 256
      %320 = vsyncadd [#allocation3], %s319
      %s321 = sshll.u32 [#allocation2], 4
      %s322 = int_to_ptr.vmem [resolvable:$true] %s321
      %327 = dma.vmem_to_hbm [thread:$0]  %s322, 256, %s7, [#allocation3], 128, 128, 8
    $region33: #{tpu_custom_call.1} parent=1 // pred_fallthru
      _
    // Predicated region
    $region34: #{tpu_custom_call.1} parent=1 // pred_check
      _
    $region35: #{tpu_custom_call.1} parent=1 // pred_check_branch
      %329 = sbr.rel (0) target = $region37
    $region36: #{tpu_custom_call.1} parent=1 // pred_region
      %330 = dma.done [#allocation3], 256
    $region37: #{tpu_custom_call.1} parent=1 // pred_fallthru
      _
    %331 = vsyncpa [#allocation3], 1

</llo_original>
